<compile_context>
chip_gen: v7x
topology: tpu7x:2x2x1
jax: 0.10.0
libtpu: 0.0.40
codegen_flags: <defaults>
</compile_context>

<pallas_src>
import jax
import jax.numpy as jnp
from jax.experimental import pallas as pl
from jax.experimental.pallas import tpu as pltpu

_LANE = 128
_SUBLANE = 8


def senet_kernel(x_ref, w1_ref, w2_ref, o_ref):
    # x_ref : (TB, FDp)  lane-dense block of flattened (and lane-padded) inputs
    # w1_ref: (FDp, R)   squeeze + excitation-1 fused weight
    # w2_ref: (R, FDp)   excitation-2 weight, pre-expanded along lanes
    x = x_ref[...]                                                    # (TB, FDp)

    # Excitation (squeeze already folded into w1): Linear -> ReLU -> Linear -> ReLU.
    h = jnp.dot(x, w1_ref[...], preferred_element_type=jnp.float32)  # (TB, R)
    h = jnp.maximum(h, 0.0)
    a = jnp.dot(h, w2_ref[...], preferred_element_type=jnp.float32)  # (TB, FDp)
    # Fuse the down-cast into the gate ReLU so the materialized gate and the
    # elementwise tail run in the input dtype (halves scratch/traffic for bf16).
    a = jnp.maximum(a, 0.0).astype(x.dtype)

    # Re-weight; store is a full-width, unmasked lane-dense vst.
    o_ref[...] = (x * a).astype(o_ref.dtype)


def _round_up(n, m):
    return (n + m - 1) // m * m


def _pick_batch_tile(B, FDp, itemsize):
    """Batch tile that (a) keeps the per-step VMEM footprint ~<= 20 MiB
    (in x2 double-buffered + out x2 + f32 gate + lane-padded hidden), and
    (b) is capped at 1024 rows so large batches always give a multi-step grid
    (pipelining + v7x megacore sharding)."""
    budget = 20 * 1024 * 1024
    per_row = (FDp * itemsize * 4      # 2x input bufs + 2x output bufs
               + FDp * 4               # f32 gate intermediate
               + _LANE * 4)            # hidden h, R lane-padded to 128
    max_rows = max(_SUBLANE, budget // per_row)
    tb = min(max_rows, 1024)
    if B <= tb:
        return B                       # full batch dim -> always a legal block
    if tb >= _LANE:
        tb = (tb // _LANE) * _LANE     # prefer multiples of 128 (MXU rows)
    else:
        tb = max((tb // _SUBLANE) * _SUBLANE, _SUBLANE)
    return tb


def senet_attention(x, w1, w2):
    """x: (B, F, D); w1: (R, F) [Linear(F, R, bias=False)]; w2: (F, R)."""
    B, F, D = x.shape
    R = w1.shape[0]
    FD = F * D
    FDp = _round_up(FD, _LANE)

    # Fused weights (tiny, built once in the wrapper, cast to x.dtype so the
    # kernel never upcasts the big x tensor).
    #   W1big[f*D+d, r] = w1[r, f] / D   -> x_flat @ W1big == mean(x,-1) @ w1.T
    #   W2big[r, f*D+d] = w2[f, r]       -> duplicates the gate along the D lanes
    w1big = jnp.repeat(w1.T / D, D, axis=0).astype(x.dtype)           # (FD, R)
    w2big = jnp.repeat(w2.T, D, axis=1).astype(x.dtype)               # (R, FD)

    x2d = x.reshape(B, FD)
    if FDp != FD:
        # Zero-pad to a lane-dense width; exact because the layers are bias-free.
        pad = FDp - FD
        x2d = jnp.pad(x2d, ((0, 0), (0, pad)))
        w1big = jnp.pad(w1big, ((0, pad), (0, 0)))
        w2big = jnp.pad(w2big, ((0, 0), (0, pad)))

    tb = _pick_batch_tile(B, FDp, x.dtype.itemsize)
    grid = (pl.cdiv(B, tb),)

    # Note: a deeper pipeline (pipeline_mode=pl.Buffered(3) on the x spec) can
    # be swept once tb is fixed; default double-buffering is used here.
    out2d = pl.pallas_call(
        senet_kernel,
        out_shape=jax.ShapeDtypeStruct((B, FDp), x.dtype),
        grid_spec=pltpu.PrefetchScalarGridSpec(
            num_scalar_prefetch=0,
            grid=grid,
            in_specs=[
                pl.BlockSpec((tb, FDp), lambda b: (b, 0)),
                pl.BlockSpec((FDp, R), lambda b: (0, 0)),
                pl.BlockSpec((R, FDp), lambda b: (0, 0)),
            ],
            out_specs=pl.BlockSpec((tb, FDp), lambda b: (b, 0)),
        ),
        compiler_params=pltpu.CompilerParams(
            dimension_semantics=("parallel",),
            vmem_limit_bytes=32 * 1024 * 1024,   # safe on v5e/v6e/v7x
        ),
    )(x2d, w1big, w2big)

    if FDp != FD:
        out2d = out2d[:, :FD]
    return out2d.reshape(B, F, D)


def senet_reference(x, w1, w2):
    z = jnp.mean(x, axis=-1)
    h = jnp.maximum(z @ w1.T, 0.0)
    a = jnp.maximum(h @ w2.T, 0.0)
    return x * a[..., None]


def _make_inputs(key, B, F, D, reduction_ratio=3, dtype=jnp.float32):
    R = max(1, int(F / reduction_ratio))
    kx, k1, k2 = jax.random.split(key, 3)
    x = jax.random.normal(kx, (B, F, D), dtype=dtype)
    # Parameter shapes match nn.Linear(F, R, bias=False) and nn.Linear(R, F, bias=False).
    w1 = jax.random.normal(k1, (R, F), dtype=dtype) * 0.1
    w2 = jax.random.normal(k2, (F, R), dtype=dtype) * 0.1
    return x, w1, w2


if __name__ == "__main__":
    key = jax.random.PRNGKey(0)
    k_a, k_b = jax.random.split(key)

    # Case 1: small shapes consistent with the module: batch=2, num_fields=8, d_embed=16.
    x, w1, w2 = _make_inputs(k_a, B=2, F=8, D=16)
    out = jax.block_until_ready(senet_attention(x, w1, w2))
    ref = senet_reference(x, w1, w2)
    assert out.shape == x.shape
    assert jnp.allclose(out, ref, atol=1e-4, rtol=1e-4), "mismatch vs reference (case 1)"

    # Case 2: exercises lane padding (F*D=63 -> 128) and a partial last batch block.
    x, w1, w2 = _make_inputs(k_b, B=2050, F=7, D=9)
    out = jax.block_until_ready(senet_attention(x, w1, w2))
    ref = senet_reference(x, w1, w2)
    assert out.shape == x.shape
    assert jnp.allclose(out, ref, atol=1e-4, rtol=1e-4), "mismatch vs reference (case 2)"

    print("KERNEL_OK")
</pallas_src>

<mosaic_0001>
module attributes {stable_mosaic.version = 11 : i64} {
  func.func @senet_kernel(%arg0: i32, %arg1: memref<2x128xf32, #tpu.memory_space<vmem>>, %arg2: memref<128x2xf32, #tpu.memory_space<vmem>>, %arg3: memref<2x128xf32, #tpu.memory_space<vmem>>, %arg4: memref<2x128xf32, #tpu.memory_space<vmem>>) attributes {dimension_semantics = [#tpu.dimension_semantics<parallel>], iteration_bounds = array<i64: 1>, scalar_prefetch = 0 : i64, scratch_operands = 0 : i64, tpu.core_type = #tpu.core_type<tc>, window_params = [{transform_indices = @transform_0, window_bounds = array<i64: 2, 128>}, {pipeline_mode = #tpu.pipeline_mode<synchronous>, transform_indices = @transform_1, window_bounds = array<i64: 128, 2>}, {pipeline_mode = #tpu.pipeline_mode<synchronous>, transform_indices = @transform_2, window_bounds = array<i64: 2, 128>}, {transform_indices = @transform_3, window_bounds = array<i64: 2, 128>}]} {
    %c0 = arith.constant 0 : index
    %c0_0 = arith.constant 0 : index
    %0 = vector.load %arg1[%c0, %c0_0] : memref<2x128xf32, #tpu.memory_space<vmem>>, vector<2x128xf32>
    %c0_1 = arith.constant 0 : index
    %c0_2 = arith.constant 0 : index
    %1 = vector.load %arg2[%c0_1, %c0_2] : memref<128x2xf32, #tpu.memory_space<vmem>>, vector<128x2xf32>
    %cst = arith.constant dense<0.000000e+00> : vector<2x2xf32>
    %2 = tpu.matmul %0, %1, %cst {dimension_numbers = #tpu.dot_dimension_numbers<[1], [0], [0], [1], [0, 0, 1, 1], [], []>} : vector<2x128xf32>, vector<128x2xf32>, vector<2x2xf32> -> vector<2x2xf32>
    %cst_3 = arith.constant 0.000000e+00 : f32
    %3 = vector.broadcast %cst_3 : f32 to vector<2x2xf32>
    %4 = arith.maximumf %2, %3 : vector<2x2xf32>
    %c0_4 = arith.constant 0 : index
    %c0_5 = arith.constant 0 : index
    %5 = vector.load %arg3[%c0_4, %c0_5] : memref<2x128xf32, #tpu.memory_space<vmem>>, vector<2x128xf32>
    %cst_6 = arith.constant dense<0.000000e+00> : vector<2x128xf32>
    %6 = tpu.matmul %4, %5, %cst_6 {dimension_numbers = #tpu.dot_dimension_numbers<[1], [0], [0], [1], [0, 0, 1, 1], [], []>} : vector<2x2xf32>, vector<2x128xf32>, vector<2x128xf32> -> vector<2x128xf32>
    %cst_7 = arith.constant 0.000000e+00 : f32
    %7 = vector.broadcast %cst_7 : f32 to vector<2x128xf32>
    %8 = arith.maximumf %6, %7 : vector<2x128xf32>
    %9 = arith.mulf %0, %8 : vector<2x128xf32>
    %c0_8 = arith.constant 0 : index
    %c0_9 = arith.constant 0 : index
    %10 = vector.load %arg4[%c0_8, %c0_9] : memref<2x128xf32, #tpu.memory_space<vmem>>, vector<2x128xf32>
    tpu.vector_store %arg4[%c0_8, %c0_9], %9 {strides = array<i32>} : memref<2x128xf32, #tpu.memory_space<vmem>>, vector<2x128xf32>,
    return
  }
  func.func @transform_0(%arg0: i32) -> (i32, i32) {
    %c0_i32 = arith.constant 0 : i32
    %c0_i32_0 = arith.constant 0 : i32
    return %arg0, %c0_i32 : i32, i32
  }
  func.func @transform_1(%arg0: i32) -> (i32, i32) {
    %c0_i32 = arith.constant 0 : i32
    %c0_i32_0 = arith.constant 0 : i32
    %c0_i32_1 = arith.constant 0 : i32
    return %c0_i32, %c0_i32_0 : i32, i32
  }
  func.func @transform_2(%arg0: i32) -> (i32, i32) {
    %c0_i32 = arith.constant 0 : i32
    %c0_i32_0 = arith.constant 0 : i32
    %c0_i32_1 = arith.constant 0 : i32
    return %c0_i32, %c0_i32_0 : i32, i32
  }
  func.func @transform_3(%arg0: i32) -> (i32, i32) {
    %c0_i32 = arith.constant 0 : i32
    %c0_i32_0 = arith.constant 0 : i32
    return %arg0, %c0_i32 : i32, i32
  }
}

</mosaic_0001>

<llo_original>
// kernel: tpu_custom_call.1
$region0: #{tpu_custom_call.1}
  #allocation0 [shape = 'u32[]', space=smem, size = 0x4, offset = 0x4, fixed_abs, tag = 'smem constant byte address 0x4 - core index']
  #allocation1 [shape = 'u32[144,128]{1,0:T(1,128)}', space=vmem, size = 0x12000, scoped, tag = 'internal scratch']
  %s0 = inlined_call_operand.vmem [shape: f32[2,128], index: 0, kind: input, shape index: {}]
  %s1 = inlined_call_operand.vmem [shape: f32[128,2], index: 1, kind: input, shape index: {}]
  %s2 = inlined_call_operand.vmem [shape: f32[2,128], index: 2, kind: input, shape index: {}]
  %s3 = inlined_call_operand.hbm [shape: f32[2,128], index: 3, kind: output, shape index: {}]
  %s4 = sld [smem:[#allocation0]]
  $region22: #{tpu_custom_call.1} parent=0
    _
  %s6 = ssub.s32 1, %s4
  %s7 = scalar_select 0, %s6, %s4
  $region1: #{tpu_custom_call.1} parent=0
    #allocation2 [shape = 'u8[1024]{0}', space=vmem, size = 0x400, scoped, tag = 'output window, operand 0, single buffered']
    #allocation3 [shape = 's32[1]{0}', space=sflag, size = 0x4, scoped, tag = 'scoped memory for tpu_custom_call.1']
    %8 = vsyncpa [#allocation3], 0
    // Predicated region
    $region2: #{tpu_custom_call.1} parent=1 // pred_check
      _
    $region3: #{tpu_custom_call.1} parent=1 // pred_check_branch
      %10 = sbr.rel (0) target = $region5
    $region4: #{tpu_custom_call.1} parent=1 // pred_region
      _
    $region5: #{tpu_custom_call.1} parent=1 // pred_fallthru
      _
    // Predicated region
    $region6: #{tpu_custom_call.1} parent=1 // pred_check
      _
    $region7: #{tpu_custom_call.1} parent=1 // pred_check_branch
      %12 = sbr.rel (0) target = $region9
    $region8: #{tpu_custom_call.1} parent=1 // pred_region
      _
    $region9: #{tpu_custom_call.1} parent=1 // pred_fallthru
      _
    // Predicated region
    $region10: #{tpu_custom_call.1} parent=1 // pred_check
      _
    $region11: #{tpu_custom_call.1} parent=1 // pred_check_branch
      %14 = sbr.rel (0) target = $region13
    $region12: #{tpu_custom_call.1} parent=1 // pred_region
      _
    $region13: #{tpu_custom_call.1} parent=1 // pred_fallthru
      _
    %v15 = vld [vmem:[%s0] sm:$0x3]
    %v16 = vld [vmem:[%s1] sm:$0xff]
    %v17 = vld [vmem:[%s1 + $0x8] sm:$0xff]
    %v18 = vld [vmem:[%s1 + $0x10] sm:$0xff]
    %v19 = vld [vmem:[%s1 + $0x18] sm:$0xff]
    %v20 = vld [vmem:[%s1 + $0x20] sm:$0xff]
    %v21 = vld [vmem:[%s1 + $0x28] sm:$0xff]
    %v22 = vld [vmem:[%s1 + $0x30] sm:$0xff]
    %v23 = vld [vmem:[%s1 + $0x38] sm:$0xff]
    %v24 = vld [vmem:[%s1 + $0x40] sm:$0xff]
    %v25 = vld [vmem:[%s1 + $0x48] sm:$0xff]
    %v26 = vld [vmem:[%s1 + $0x50] sm:$0xff]
    %v27 = vld [vmem:[%s1 + $0x58] sm:$0xff]
    %v28 = vld [vmem:[%s1 + $0x60] sm:$0xff]
    %v29 = vld [vmem:[%s1 + $0x68] sm:$0xff]
    %v30 = vld [vmem:[%s1 + $0x70] sm:$0xff]
    %v31 = vld [vmem:[%s1 + $0x78] sm:$0xff]
    %32 = vmatprep.subr.mxu0 0.0
    %33 = vmatpush1.msra.mxu0 %v16
    %34 = vmatprep.subr.mxu0 0.0
    %35 = vmatpush1.msra.mxu0 %v17
    %36 = vmatprep.subr.mxu0 0.0
    %37 = vmatpush1.msra.mxu0 %v18
    %38 = vmatprep.subr.mxu0 0.0
    %39 = vmatpush1.msra.mxu0 %v19
    %40 = vmatprep.subr.mxu0 0.0
    %41 = vmatpush1.msra.mxu0 %v20
    %42 = vmatprep.subr.mxu0 0.0
    %43 = vmatpush1.msra.mxu0 %v21
    %44 = vmatprep.subr.mxu0 0.0
    %45 = vmatpush1.msra.mxu0 %v22
    %46 = vmatprep.subr.mxu0 0.0
    %47 = vmatpush1.msra.mxu0 %v23
    %48 = vmatprep.subr.mxu0 0.0
    %49 = vmatpush1.msra.mxu0 %v24
    %50 = vmatprep.subr.mxu0 0.0
    %51 = vmatpush1.msra.mxu0 %v25
    %52 = vmatprep.subr.mxu0 0.0
    %53 = vmatpush1.msra.mxu0 %v26
    %54 = vmatprep.subr.mxu0 0.0
    %55 = vmatpush1.msra.mxu0 %v27
    %56 = vmatprep.subr.mxu0 0.0
    %57 = vmatpush1.msra.mxu0 %v28
    %58 = vmatprep.subr.mxu0 0.0
    %59 = vmatpush1.msra.mxu0 %v29
    %60 = vmatprep.subr.mxu0 0.0
    %61 = vmatpush1.msra.mxu0 %v30
    %62 = vmatprep.subr.mxu0 0.0
    %63 = vmatpush1.msra.mxu0 %v31
    %64 = vmatprep.subr.mxu0 0.0
    %65 = vmatpush1.msra.mxu0 0.0
    %66 = vmatprep.subr.mxu0 0.0
    %67 = vmatpush1.msra.mxu0 0.0
    %68 = vmatprep.subr.mxu0 0.0
    %69 = vmatpush1.msra.mxu0 0.0
    %70 = vmatprep.subr.mxu0 0.0
    %71 = vmatpush1.msra.mxu0 0.0
    %72 = vmatprep.subr.mxu0 0.0
    %73 = vmatpush1.msra.mxu0 0.0
    %74 = vmatprep.subr.mxu0 0.0
    %75 = vmatpush1.msra.mxu0 0.0
    %76 = vmatprep.subr.mxu0 0.0
    %77 = vmatpush1.msra.mxu0 0.0
    %78 = vmatprep.subr.mxu0 0.0
    %79 = vmatpush1.msra.mxu0 0.0
    %80 = vmatprep.subr.mxu0 0.0
    %81 = vmatpush1.msra.mxu0 0.0
    %82 = vmatprep.subr.mxu0 0.0
    %83 = vmatpush1.msra.mxu0 0.0
    %84 = vmatprep.subr.mxu0 0.0
    %85 = vmatpush1.msra.mxu0 0.0
    %86 = vmatprep.subr.mxu0 0.0
    %87 = vmatpush1.msra.mxu0 0.0
    %88 = vmatprep.subr.mxu0 0.0
    %89 = vmatpush1.msra.mxu0 0.0
    %90 = vmatprep.subr.mxu0 0.0
    %91 = vmatpush1.msra.mxu0 0.0
    %92 = vmatprep.subr.mxu0 0.0
    %93 = vmatpush1.msra.mxu0 0.0
    %94 = vmatprep.subr.mxu0 0.0
    %95 = vmatpush1.msra.mxu0 0.0
    %96 = vmatprep.mubr.f32.mxu0 0.0
    %97 = vmatmul.mubr.f32.gmra.mrb[0].mxu0 %v15
    %v98 = vpop.f32.mrb[0].mxu0
    %v99 = vadd.f32 0.0, %v98
    %v100 = vpop.f32.mrb[0].mxu0
    %101 = vdwg.mxu0
    %v102 = vmax.f32 %v99, 0.0
    %v103 = vld [vmem:[%s2] sm:$0x3]
    %vm104 = vcmask 15360
    %v106 = vsel %vm104, %v102, 0
    %vm108 = vcmask 1041408
    %v110 = vsel %vm108, %v103, 0
    %112 = vmatprep.subr.mxu0 0.0
    %113 = vmatpush1.msra.mxu0 %v110
    %114 = vmatprep.subr.mxu0 0.0
    %115 = vmatpush1.msra.mxu0 0.0
    %116 = vmatprep.subr.mxu0 0.0
    %117 = vmatpush1.msra.mxu0 0.0
    %118 = vmatprep.subr.mxu0 0.0
    %119 = vmatpush1.msra.mxu0 0.0
    %120 = vmatprep.subr.mxu0 0.0
    %121 = vmatpush1.msra.mxu0 0.0
    %122 = vmatprep.subr.mxu0 0.0
    %123 = vmatpush1.msra.mxu0 0.0
    %124 = vmatprep.subr.mxu0 0.0
    %125 = vmatpush1.msra.mxu0 0.0
    %126 = vmatprep.subr.mxu0 0.0
    %127 = vmatpush1.msra.mxu0 0.0
    %128 = vmatprep.subr.mxu0 0.0
    %129 = vmatpush1.msra.mxu0 0.0
    %130 = vmatprep.subr.mxu0 0.0
    %131 = vmatpush1.msra.mxu0 0.0
    %132 = vmatprep.subr.mxu0 0.0
    %133 = vmatpush1.msra.mxu0 0.0
    %134 = vmatprep.subr.mxu0 0.0
    %135 = vmatpush1.msra.mxu0 0.0
    %136 = vmatprep.subr.mxu0 0.0
    %137 = vmatpush1.msra.mxu0 0.0
    %138 = vmatprep.subr.mxu0 0.0
    %139 = vmatpush1.msra.mxu0 0.0
    %140 = vmatprep.subr.mxu0 0.0
    %141 = vmatpush1.msra.mxu0 0.0
    %142 = vmatprep.subr.mxu0 0.0
    %143 = vmatpush1.msra.mxu0 0.0
    %144 = vmatprep.subr.mxu0 0.0
    %145 = vmatpush1.msra.mxu0 0.0
    %146 = vmatprep.subr.mxu0 0.0
    %147 = vmatpush1.msra.mxu0 0.0
    %148 = vmatprep.subr.mxu0 0.0
    %149 = vmatpush1.msra.mxu0 0.0
    %150 = vmatprep.subr.mxu0 0.0
    %151 = vmatpush1.msra.mxu0 0.0
    %152 = vmatprep.subr.mxu0 0.0
    %153 = vmatpush1.msra.mxu0 0.0
    %154 = vmatprep.subr.mxu0 0.0
    %155 = vmatpush1.msra.mxu0 0.0
    %156 = vmatprep.subr.mxu0 0.0
    %157 = vmatpush1.msra.mxu0 0.0
    %158 = vmatprep.subr.mxu0 0.0
    %159 = vmatpush1.msra.mxu0 0.0
    %160 = vmatprep.subr.mxu0 0.0
    %161 = vmatpush1.msra.mxu0 0.0
    %162 = vmatprep.subr.mxu0 0.0
    %163 = vmatpush1.msra.mxu0 0.0
    %164 = vmatprep.subr.mxu0 0.0
    %165 = vmatpush1.msra.mxu0 0.0
    %166 = vmatprep.subr.mxu0 0.0
    %167 = vmatpush1.msra.mxu0 0.0
    %168 = vmatprep.subr.mxu0 0.0
    %169 = vmatpush1.msra.mxu0 0.0
    %170 = vmatprep.subr.mxu0 0.0
    %171 = vmatpush1.msra.mxu0 0.0
    %172 = vmatprep.subr.mxu0 0.0
    %173 = vmatpush1.msra.mxu0 0.0
    %174 = vmatprep.subr.mxu0 0.0
    %175 = vmatpush1.msra.mxu0 0.0
    %176 = vmatprep.mubr.f32.mxu0 0.0
    %177 = vmatmul.mubr.f32.gmra.mrb[0].mxu0 %v106
    %v178 = vpop.f32.mrb[0].mxu0
    %v179 = vadd.f32 0.0, %v178
    %v180 = vpop.f32.mrb[0].mxu0
    %181 = vdwg.mxu0
    %v182 = vmax.f32 %v179, 0.0
    %v183 = vmul.f32 %v15, %v182
    %184 = vst [vmem:[#allocation2] sm:$0x3] %v183
    // Predicated region
    $region14: #{tpu_custom_call.1} parent=1 // pred_check
      _
    $region15: #{tpu_custom_call.1} parent=1 // pred_check_branch
      %186 = sbr.rel (0) target = $region17
    $region16: #{tpu_custom_call.1} parent=1 // pred_region
      %s188 = ssub.s32 32, 32
      %189 = vsyncadd [#allocation3], %s188
      %s191 = sshll.u32 [#allocation2], 4
      %s192 = int_to_ptr.vmem [resolvable:$true] %s191
      %194 = dma.vmem_to_hbm [thread:$0]  %s192, 32, %s3, [#allocation3]
    $region17: #{tpu_custom_call.1} parent=1 // pred_fallthru
      _
    // Predicated region
    $region18: #{tpu_custom_call.1} parent=1 // pred_check
      _
    $region19: #{tpu_custom_call.1} parent=1 // pred_check_branch
      %196 = sbr.rel (0) target = $region21
    $region20: #{tpu_custom_call.1} parent=1 // pred_region
      %197 = dma.done [#allocation3], 32
    $region21: #{tpu_custom_call.1} parent=1 // pred_fallthru
      _
    %198 = vsyncpa [#allocation3], 1

</llo_original>
